<compile_context>
chip_gen: v7x
topology: tpu7x:2x2x1
jax: 0.10.0
libtpu: 0.0.40
codegen_flags: <defaults>
</compile_context>

<pallas_src>
import functools

import jax
import jax.numpy as jnp
import numpy as np
from jax import lax
from jax.experimental import pallas as pl
from jax.experimental.pallas import tpu as pltpu


# ----------------------------------------------------------------------------
# Kernel: per-row variance (ddof=0) -> scale rows (no mean subtraction in out).
# x_ref: (block_rows, C)   w_ref: (1, C)   o_ref: (block_rows, C)
# ----------------------------------------------------------------------------
def _biasfree_layernorm_kernel(x_ref, w_ref, o_ref, *, eps):
    x = x_ref[...].astype(jnp.float32)                      # (BR, C)
    # Single-pass variance: E[x^2] - E[x]^2 (no (BR,C) diff temporary).
    mu = jnp.mean(x, axis=-1, keepdims=True)                # XLU reduce
    ex2 = jnp.mean(x * x, axis=-1, keepdims=True)           # XLU reduce
    var = jnp.maximum(ex2 - mu * mu, 0.0)                   # guard cancellation
    inv = lax.rsqrt(var + eps)                               # EUP slot
    w = w_ref[...].astype(jnp.float32)                       # (1, C) broadcast
    o_ref[...] = (x * inv * w).astype(o_ref.dtype)


# ----------------------------------------------------------------------------
# Wrapper
# ----------------------------------------------------------------------------
def biasfree_layernorm(x, weight, *, eps=1e-5, block_rows=None,
                       target_block_bytes=2 * 1024 * 1024):
    """BiasFree LayerNorm over the last dim. Accepts any leading shape."""
    orig_shape = x.shape
    C = orig_shape[-1]
    assert weight.shape[-1] == C

    x2 = x.reshape(-1, C)                                    # lane-dense slab
    R = x2.shape[0]
    itemsize = jnp.dtype(x.dtype).itemsize
    pack = {4: 8, 2: 16, 1: 32}.get(itemsize, 8)             # sublane packing

    # Row-block sized by bytes (~2 MiB default): block_rows ~= bytes/(C*item).
    if block_rows is None:
        br = max(pack, target_block_bytes // (C * itemsize))
    else:
        br = block_rows
    br = min(br, R)
    if br < R:
        br = max(pack, (br // pack) * pack)                  # sublane multiple

    grid = (pl.cdiv(R, br),)                                 # ragged ok: masked

    cost = pl.CostEstimate(
        flops=10 * R * C,
        transcendentals=R,
        bytes_accessed=2 * R * C * itemsize,
    )

    out = pl.pallas_call(
        functools.partial(_biasfree_layernorm_kernel, eps=eps),
        out_shape=jax.ShapeDtypeStruct((R, C), x.dtype),
        grid=grid,
        in_specs=[
            pl.BlockSpec((br, C), lambda i: (i, 0)),
            pl.BlockSpec((1, C), lambda i: (0, 0)),
        ],
        out_specs=pl.BlockSpec((br, C), lambda i: (i, 0)),
        compiler_params=pltpu.CompilerParams(
            dimension_semantics=("parallel",)),
        cost_estimate=cost,
    )(x2, weight.reshape(1, C))

    return out.reshape(orig_shape)


# ----------------------------------------------------------------------------
# Pure-JAX reference matching the PyTorch semantics.
# ----------------------------------------------------------------------------
def biasfree_layernorm_reference(x, weight, eps=1e-5):
    sigma = jnp.var(x, axis=-1, keepdims=True)   # ddof=0 == unbiased=False
    return x / jnp.sqrt(sigma + eps) * weight.reshape(
        (1,) * (x.ndim - 1) + (-1,))


if __name__ == "__main__":
    key = jax.random.PRNGKey(0)
    k1, k2, k3, k4 = jax.random.split(key, 4)

    # Case 1: Restormer-style tokens x channels, C=48 (not a 128 multiple;
    # full-extent last block dim, masked stores).
    x1 = jax.random.normal(k1, (2, 128, 48), jnp.float32)
    w1 = 1.0 + 0.05 * jax.random.normal(k2, (48,), jnp.float32)
    out1 = jax.block_until_ready(biasfree_layernorm(x1, w1))
    ref1 = biasfree_layernorm_reference(x1, w1)
    assert out1.shape == x1.shape
    np.testing.assert_allclose(np.asarray(out1), np.asarray(ref1),
                               atol=2e-5, rtol=2e-5)

    # Case 2: ragged row count (R = 3*37 = 111, br = 16 -> masked final block),
    # lane-dense C=128. Exercises the no-pad / no-slice ragged path.
    x2 = jax.random.normal(k3, (3, 37, 128), jnp.float32)
    w2 = 1.0 + 0.05 * jax.random.normal(k4, (128,), jnp.float32)
    out2 = jax.block_until_ready(biasfree_layernorm(x2, w2, block_rows=16))
    ref2 = biasfree_layernorm_reference(x2, w2)
    assert out2.shape == x2.shape
    np.testing.assert_allclose(np.asarray(out2), np.asarray(ref2),
                               atol=2e-5, rtol=2e-5)

    print("KERNEL_OK")
</pallas_src>

<mosaic_0001>
module attributes {stable_mosaic.version = 11 : i64} {
  func.func @_biasfree_layernorm_kernel(%arg0: i32, %arg1: memref<256x48xf32, #tpu.memory_space<vmem>>, %arg2: memref<1x48xf32, #tpu.memory_space<vmem>>, %arg3: memref<256x48xf32, #tpu.memory_space<vmem>>) attributes {dimension_semantics = [#tpu.dimension_semantics<parallel>], iteration_bounds = array<i64: 1>, scalar_prefetch = 0 : i64, scratch_operands = 0 : i64, tpu.core_type = #tpu.core_type<tc>, window_params = [{transform_indices = @transform_0, window_bounds = array<i64: 256, 48>}, {pipeline_mode = #tpu.pipeline_mode<synchronous>, transform_indices = @transform_1, window_bounds = array<i64: 1, 48>}, {transform_indices = @transform_2, window_bounds = array<i64: 256, 48>}]} {
    %c0 = arith.constant 0 : index
    %c0_0 = arith.constant 0 : index
    %0 = vector.load %arg1[%c0, %c0_0] : memref<256x48xf32, #tpu.memory_space<vmem>>, vector<256x48xf32>
    %cst = arith.constant dense<0.000000e+00> : vector<256xf32>
    %1 = vector.multi_reduction <add>, %0, %cst [1] : vector<256x48xf32> to vector<256xf32>
    %2 = vector.shape_cast %1 : vector<256xf32> to vector<256x1xf32>
    %cst_1 = arith.constant 4.800000e+01 : f32
    %3 = vector.broadcast %cst_1 : f32 to vector<256x1xf32>
    %4 = arith.divf %2, %3 : vector<256x1xf32>
    %5 = arith.mulf %0, %0 : vector<256x48xf32>
    %cst_2 = arith.constant dense<0.000000e+00> : vector<256xf32>
    %6 = vector.multi_reduction <add>, %5, %cst_2 [1] : vector<256x48xf32> to vector<256xf32>
    %7 = vector.shape_cast %6 : vector<256xf32> to vector<256x1xf32>
    %cst_3 = arith.constant 4.800000e+01 : f32
    %8 = vector.broadcast %cst_3 : f32 to vector<256x1xf32>
    %9 = arith.divf %7, %8 : vector<256x1xf32>
    %10 = arith.mulf %4, %4 : vector<256x1xf32>
    %11 = arith.subf %9, %10 : vector<256x1xf32>
    %cst_4 = arith.constant 0.000000e+00 : f32
    %12 = vector.broadcast %cst_4 : f32 to vector<256x1xf32>
    %13 = arith.maximumf %11, %12 : vector<256x1xf32>
    %cst_5 = arith.constant 9.99999974E-6 : f32
    %14 = vector.broadcast %cst_5 : f32 to vector<256x1xf32>
    %15 = arith.addf %13, %14 : vector<256x1xf32>
    %16 = math.rsqrt %15 : vector<256x1xf32>
    %c0_6 = arith.constant 0 : index
    %c0_7 = arith.constant 0 : index
    %17 = vector.load %arg2[%c0_6, %c0_7] : memref<1x48xf32, #tpu.memory_space<vmem>>, vector<1x48xf32>
    %18 = vector.broadcast %16 : vector<256x1xf32> to vector<256x48xf32>
    %19 = arith.mulf %0, %18 : vector<256x48xf32>
    %20 = vector.broadcast %17 : vector<1x48xf32> to vector<256x48xf32>
    %21 = arith.mulf %19, %20 : vector<256x48xf32>
    %c0_8 = arith.constant 0 : index
    %c0_9 = arith.constant 0 : index
    %22 = vector.load %arg3[%c0_8, %c0_9] : memref<256x48xf32, #tpu.memory_space<vmem>>, vector<256x48xf32>
    tpu.vector_store %arg3[%c0_8, %c0_9], %21 {strides = array<i32>} : memref<256x48xf32, #tpu.memory_space<vmem>>, vector<256x48xf32>,
    return
  }
  func.func @transform_0(%arg0: i32) -> (i32, i32) {
    %c0_i32 = arith.constant 0 : i32
    %c0_i32_0 = arith.constant 0 : i32
    return %arg0, %c0_i32 : i32, i32
  }
  func.func @transform_1(%arg0: i32) -> (i32, i32) {
    %c0_i32 = arith.constant 0 : i32
    %c0_i32_0 = arith.constant 0 : i32
    %c0_i32_1 = arith.constant 0 : i32
    return %c0_i32, %c0_i32_0 : i32, i32
  }
  func.func @transform_2(%arg0: i32) -> (i32, i32) {
    %c0_i32 = arith.constant 0 : i32
    %c0_i32_0 = arith.constant 0 : i32
    return %arg0, %c0_i32 : i32, i32
  }
}

</mosaic_0001>

<llo_original>
// kernel: tpu_custom_call.1
$region0: #{tpu_custom_call.1}
  #allocation0 [shape = 'u32[]', space=smem, size = 0x4, offset = 0x4, fixed_abs, tag = 'smem constant byte address 0x4 - core index']
  #allocation1 [shape = 'u32[144,128]{1,0:T(1,128)}', space=vmem, size = 0x12000, scoped, tag = 'internal scratch']
  %s0 = inlined_call_operand.vmem [shape: f32[256,48], index: 0, kind: input, shape index: {}]
  %s1 = inlined_call_operand.vmem [shape: f32[1,48], index: 1, kind: input, shape index: {}]
  %s2 = inlined_call_operand.vmem [shape: f32[256,48], index: 2, kind: output, shape index: {}]
  %s3 = sld [smem:[#allocation0]]
  $region18: #{tpu_custom_call.1} parent=0
    _
  %s5 = ssub.s32 1, %s3
  %s6 = scalar_select 0, %s5, %s3
  // Predicated region
  $region2: #{tpu_custom_call.1} parent=0 // pred_check
    _
  $region3: #{tpu_custom_call.1} parent=0 // pred_check_branch
    %8 = sbr.rel (0) target = $region5
  $region4: #{tpu_custom_call.1} parent=0 // pred_region
    _
  $region5: #{tpu_custom_call.1} parent=0 // pred_fallthru
    _
  // Predicated region
  $region6: #{tpu_custom_call.1} parent=0 // pred_check
    _
  $region7: #{tpu_custom_call.1} parent=0 // pred_check_branch
    %10 = sbr.rel (0) target = $region9
  $region8: #{tpu_custom_call.1} parent=0 // pred_region
    _
  $region9: #{tpu_custom_call.1} parent=0 // pred_fallthru
    _
  %v11 = vld [vmem:[%s0] sm:$0xff]
  %v12 = vld [vmem:[%s0 + $0x8] sm:$0xff]
  %v13 = vld [vmem:[%s0 + $0x10] sm:$0xff]
  %v14 = vld [vmem:[%s0 + $0x18] sm:$0xff]
  %v15 = vld [vmem:[%s0 + $0x20] sm:$0xff]
  %v16 = vld [vmem:[%s0 + $0x28] sm:$0xff]
  %v17 = vld [vmem:[%s0 + $0x30] sm:$0xff]
  %v18 = vld [vmem:[%s0 + $0x38] sm:$0xff]
  %v19 = vld [vmem:[%s0 + $0x40] sm:$0xff]
  %v20 = vld [vmem:[%s0 + $0x48] sm:$0xff]
  %v21 = vld [vmem:[%s0 + $0x50] sm:$0xff]
  %v22 = vld [vmem:[%s0 + $0x58] sm:$0xff]
  %v23 = vld [vmem:[%s0 + $0x60] sm:$0xff]
  %v24 = vld [vmem:[%s0 + $0x68] sm:$0xff]
  %v25 = vld [vmem:[%s0 + $0x70] sm:$0xff]
  %v26 = vld [vmem:[%s0 + $0x78] sm:$0xff]
  %v27 = vld [vmem:[%s0 + $0x80] sm:$0xff]
  %v28 = vld [vmem:[%s0 + $0x88] sm:$0xff]
  %v29 = vld [vmem:[%s0 + $0x90] sm:$0xff]
  %v30 = vld [vmem:[%s0 + $0x98] sm:$0xff]
  %v31 = vld [vmem:[%s0 + $0xa0] sm:$0xff]
  %v32 = vld [vmem:[%s0 + $0xa8] sm:$0xff]
  %v33 = vld [vmem:[%s0 + $0xb0] sm:$0xff]
  %v34 = vld [vmem:[%s0 + $0xb8] sm:$0xff]
  %v35 = vld [vmem:[%s0 + $0xc0] sm:$0xff]
  %v36 = vld [vmem:[%s0 + $0xc8] sm:$0xff]
  %v37 = vld [vmem:[%s0 + $0xd0] sm:$0xff]
  %v38 = vld [vmem:[%s0 + $0xd8] sm:$0xff]
  %v39 = vld [vmem:[%s0 + $0xe0] sm:$0xff]
  %v40 = vld [vmem:[%s0 + $0xe8] sm:$0xff]
  %v41 = vld [vmem:[%s0 + $0xf0] sm:$0xff]
  %v42 = vld [vmem:[%s0 + $0xf8] sm:$0xff]
  %vm43 = vcmask 392192
  %v44 = vsel %vm43, %v11, 0.0
  %45 = vadd.xlane.f32.xlu0 %v44
  %v46 = vpop.xlane.xlu0 %45
  %v47 = vsel %vm43, %v12, 0.0
  %48 = vadd.xlane.f32.xlu0 %v47
  %v49 = vpop.xlane.xlu0 %48
  %v50 = vsel %vm43, %v13, 0.0
  %51 = vadd.xlane.f32.xlu0 %v50
  %v52 = vpop.xlane.xlu0 %51
  %v53 = vsel %vm43, %v14, 0.0
  %54 = vadd.xlane.f32.xlu0 %v53
  %v55 = vpop.xlane.xlu0 %54
  %v56 = vsel %vm43, %v15, 0.0
  %57 = vadd.xlane.f32.xlu0 %v56
  %v58 = vpop.xlane.xlu0 %57
  %v59 = vsel %vm43, %v16, 0.0
  %60 = vadd.xlane.f32.xlu0 %v59
  %v61 = vpop.xlane.xlu0 %60
  %v62 = vsel %vm43, %v17, 0.0
  %63 = vadd.xlane.f32.xlu0 %v62
  %v64 = vpop.xlane.xlu0 %63
  %v65 = vsel %vm43, %v18, 0.0
  %66 = vadd.xlane.f32.xlu0 %v65
  %v67 = vpop.xlane.xlu0 %66
  %v68 = vsel %vm43, %v19, 0.0
  %69 = vadd.xlane.f32.xlu0 %v68
  %v70 = vpop.xlane.xlu0 %69
  %v71 = vsel %vm43, %v20, 0.0
  %72 = vadd.xlane.f32.xlu0 %v71
  %v73 = vpop.xlane.xlu0 %72
  %v74 = vsel %vm43, %v21, 0.0
  %75 = vadd.xlane.f32.xlu0 %v74
  %v76 = vpop.xlane.xlu0 %75
  %v77 = vsel %vm43, %v22, 0.0
  %78 = vadd.xlane.f32.xlu0 %v77
  %v79 = vpop.xlane.xlu0 %78
  %v80 = vsel %vm43, %v23, 0.0
  %81 = vadd.xlane.f32.xlu0 %v80
  %v82 = vpop.xlane.xlu0 %81
  %v83 = vsel %vm43, %v24, 0.0
  %84 = vadd.xlane.f32.xlu0 %v83
  %v85 = vpop.xlane.xlu0 %84
  %v86 = vsel %vm43, %v25, 0.0
  %87 = vadd.xlane.f32.xlu0 %v86
  %v88 = vpop.xlane.xlu0 %87
  %v89 = vsel %vm43, %v26, 0.0
  %90 = vadd.xlane.f32.xlu0 %v89
  %v91 = vpop.xlane.xlu0 %90
  %v92 = vsel %vm43, %v27, 0.0
  %93 = vadd.xlane.f32.xlu0 %v92
  %v94 = vpop.xlane.xlu0 %93
  %v95 = vsel %vm43, %v28, 0.0
  %96 = vadd.xlane.f32.xlu0 %v95
  %v97 = vpop.xlane.xlu0 %96
  %v98 = vsel %vm43, %v29, 0.0
  %99 = vadd.xlane.f32.xlu0 %v98
  %v100 = vpop.xlane.xlu0 %99
  %v101 = vsel %vm43, %v30, 0.0
  %102 = vadd.xlane.f32.xlu0 %v101
  %v103 = vpop.xlane.xlu0 %102
  %v104 = vsel %vm43, %v31, 0.0
  %105 = vadd.xlane.f32.xlu0 %v104
  %v106 = vpop.xlane.xlu0 %105
  %v107 = vsel %vm43, %v32, 0.0
  %108 = vadd.xlane.f32.xlu0 %v107
  %v109 = vpop.xlane.xlu0 %108
  %v110 = vsel %vm43, %v33, 0.0
  %111 = vadd.xlane.f32.xlu0 %v110
  %v112 = vpop.xlane.xlu0 %111
  %v113 = vsel %vm43, %v34, 0.0
  %114 = vadd.xlane.f32.xlu0 %v113
  %v115 = vpop.xlane.xlu0 %114
  %v116 = vsel %vm43, %v35, 0.0
  %117 = vadd.xlane.f32.xlu0 %v116
  %v118 = vpop.xlane.xlu0 %117
  %v119 = vsel %vm43, %v36, 0.0
  %120 = vadd.xlane.f32.xlu0 %v119
  %v121 = vpop.xlane.xlu0 %120
  %v122 = vsel %vm43, %v37, 0.0
  %123 = vadd.xlane.f32.xlu0 %v122
  %v124 = vpop.xlane.xlu0 %123
  %v125 = vsel %vm43, %v38, 0.0
  %126 = vadd.xlane.f32.xlu0 %v125
  %v127 = vpop.xlane.xlu0 %126
  %v128 = vsel %vm43, %v39, 0.0
  %129 = vadd.xlane.f32.xlu0 %v128
  %v130 = vpop.xlane.xlu0 %129
  %v131 = vsel %vm43, %v40, 0.0
  %132 = vadd.xlane.f32.xlu0 %v131
  %v133 = vpop.xlane.xlu0 %132
  %v134 = vsel %vm43, %v41, 0.0
  %135 = vadd.xlane.f32.xlu0 %v134
  %v136 = vpop.xlane.xlu0 %135
  %v137 = vsel %vm43, %v42, 0.0
  %138 = vadd.xlane.f32.xlu0 %v137
  %v139 = vpop.xlane.xlu0 %138
  %v140 = vrcp.pop 48.0
  %v141 = vmul.f32 %v46, %v140
  %v142 = vmul.f32 %v49, %v140
  %v143 = vmul.f32 %v52, %v140
  %v144 = vmul.f32 %v55, %v140
  %v145 = vmul.f32 %v58, %v140
  %v146 = vmul.f32 %v61, %v140
  %v147 = vmul.f32 %v64, %v140
  %v148 = vmul.f32 %v67, %v140
  %v149 = vmul.f32 %v70, %v140
  %v150 = vmul.f32 %v73, %v140
  %v151 = vmul.f32 %v76, %v140
  %v152 = vmul.f32 %v79, %v140
  %v153 = vmul.f32 %v82, %v140
  %v154 = vmul.f32 %v85, %v140
  %v155 = vmul.f32 %v88, %v140
  %v156 = vmul.f32 %v91, %v140
  %v157 = vmul.f32 %v94, %v140
  %v158 = vmul.f32 %v97, %v140
  %v159 = vmul.f32 %v100, %v140
  %v160 = vmul.f32 %v103, %v140
  %v161 = vmul.f32 %v106, %v140
  %v162 = vmul.f32 %v109, %v140
  %v163 = vmul.f32 %v112, %v140
  %v164 = vmul.f32 %v115, %v140
  %v165 = vmul.f32 %v118, %v140
  %v166 = vmul.f32 %v121, %v140
  %v167 = vmul.f32 %v124, %v140
  %v168 = vmul.f32 %v127, %v140
  %v169 = vmul.f32 %v130, %v140
  %v170 = vmul.f32 %v133, %v140
  %v171 = vmul.f32 %v136, %v140
  %v172 = vmul.f32 %v139, %v140
  %v173 = vmul.f32 %v11, %v11
  %v174 = vmul.f32 %v12, %v12
  %v175 = vmul.f32 %v13, %v13
  %v176 = vmul.f32 %v14, %v14
  %v177 = vmul.f32 %v15, %v15
  %v178 = vmul.f32 %v16, %v16
  %v179 = vmul.f32 %v17, %v17
  %v180 = vmul.f32 %v18, %v18
  %v181 = vmul.f32 %v19, %v19
  %v182 = vmul.f32 %v20, %v20
  %v183 = vmul.f32 %v21, %v21
  %v184 = vmul.f32 %v22, %v22
  %v185 = vmul.f32 %v23, %v23
  %v186 = vmul.f32 %v24, %v24
  %v187 = vmul.f32 %v25, %v25
  %v188 = vmul.f32 %v26, %v26
  %v189 = vmul.f32 %v27, %v27
  %v190 = vmul.f32 %v28, %v28
  %v191 = vmul.f32 %v29, %v29
  %v192 = vmul.f32 %v30, %v30
  %v193 = vmul.f32 %v31, %v31
  %v194 = vmul.f32 %v32, %v32
  %v195 = vmul.f32 %v33, %v33
  %v196 = vmul.f32 %v34, %v34
  %v197 = vmul.f32 %v35, %v35
  %v198 = vmul.f32 %v36, %v36
  %v199 = vmul.f32 %v37, %v37
  %v200 = vmul.f32 %v38, %v38
  %v201 = vmul.f32 %v39, %v39
  %v202 = vmul.f32 %v40, %v40
  %v203 = vmul.f32 %v41, %v41
  %v204 = vmul.f32 %v42, %v42
  %v205 = vsel %vm43, %v173, 0.0
  %206 = vadd.xlane.f32.xlu0 %v205
  %v207 = vpop.xlane.xlu0 %206
  %v208 = vsel %vm43, %v174, 0.0
  %209 = vadd.xlane.f32.xlu0 %v208
  %v210 = vpop.xlane.xlu0 %209
  %v211 = vsel %vm43, %v175, 0.0
  %212 = vadd.xlane.f32.xlu0 %v211
  %v213 = vpop.xlane.xlu0 %212
  %v214 = vsel %vm43, %v176, 0.0
  %215 = vadd.xlane.f32.xlu0 %v214
  %v216 = vpop.xlane.xlu0 %215
  %v217 = vsel %vm43, %v177, 0.0
  %218 = vadd.xlane.f32.xlu0 %v217
  %v219 = vpop.xlane.xlu0 %218
  %v220 = vsel %vm43, %v178, 0.0
  %221 = vadd.xlane.f32.xlu0 %v220
  %v222 = vpop.xlane.xlu0 %221
  %v223 = vsel %vm43, %v179, 0.0
  %224 = vadd.xlane.f32.xlu0 %v223
  %v225 = vpop.xlane.xlu0 %224
  %v226 = vsel %vm43, %v180, 0.0
  %227 = vadd.xlane.f32.xlu0 %v226
  %v228 = vpop.xlane.xlu0 %227
  %v229 = vsel %vm43, %v181, 0.0
  %230 = vadd.xlane.f32.xlu0 %v229
  %v231 = vpop.xlane.xlu0 %230
  %v232 = vsel %vm43, %v182, 0.0
  %233 = vadd.xlane.f32.xlu0 %v232
  %v234 = vpop.xlane.xlu0 %233
  %v235 = vsel %vm43, %v183, 0.0
  %236 = vadd.xlane.f32.xlu0 %v235
  %v237 = vpop.xlane.xlu0 %236
  %v238 = vsel %vm43, %v184, 0.0
  %239 = vadd.xlane.f32.xlu0 %v238
  %v240 = vpop.xlane.xlu0 %239
  %v241 = vsel %vm43, %v185, 0.0
  %242 = vadd.xlane.f32.xlu0 %v241
  %v243 = vpop.xlane.xlu0 %242
  %v244 = vsel %vm43, %v186, 0.0
  %245 = vadd.xlane.f32.xlu0 %v244
  %v246 = vpop.xlane.xlu0 %245
  %v247 = vsel %vm43, %v187, 0.0
  %248 = vadd.xlane.f32.xlu0 %v247
  %v249 = vpop.xlane.xlu0 %248
  %v250 = vsel %vm43, %v188, 0.0
  %251 = vadd.xlane.f32.xlu0 %v250
  %v252 = vpop.xlane.xlu0 %251
  %v253 = vsel %vm43, %v189, 0.0
  %254 = vadd.xlane.f32.xlu0 %v253
  %v255 = vpop.xlane.xlu0 %254
  %v256 = vsel %vm43, %v190, 0.0
  %257 = vadd.xlane.f32.xlu0 %v256
  %v258 = vpop.xlane.xlu0 %257
  %v259 = vsel %vm43, %v191, 0.0
  %260 = vadd.xlane.f32.xlu0 %v259
  %v261 = vpop.xlane.xlu0 %260
  %v262 = vsel %vm43, %v192, 0.0
  %263 = vadd.xlane.f32.xlu0 %v262
  %v264 = vpop.xlane.xlu0 %263
  %v265 = vsel %vm43, %v193, 0.0
  %266 = vadd.xlane.f32.xlu0 %v265
  %v267 = vpop.xlane.xlu0 %266
  %v268 = vsel %vm43, %v194, 0.0
  %269 = vadd.xlane.f32.xlu0 %v268
  %v270 = vpop.xlane.xlu0 %269
  %v271 = vsel %vm43, %v195, 0.0
  %272 = vadd.xlane.f32.xlu0 %v271
  %v273 = vpop.xlane.xlu0 %272
  %v274 = vsel %vm43, %v196, 0.0
  %275 = vadd.xlane.f32.xlu0 %v274
  %v276 = vpop.xlane.xlu0 %275
  %v277 = vsel %vm43, %v197, 0.0
  %278 = vadd.xlane.f32.xlu0 %v277
  %v279 = vpop.xlane.xlu0 %278
  %v280 = vsel %vm43, %v198, 0.0
  %281 = vadd.xlane.f32.xlu0 %v280
  %v282 = vpop.xlane.xlu0 %281
  %v283 = vsel %vm43, %v199, 0.0
  %284 = vadd.xlane.f32.xlu0 %v283
  %v285 = vpop.xlane.xlu0 %284
  %v286 = vsel %vm43, %v200, 0.0
  %287 = vadd.xlane.f32.xlu0 %v286
  %v288 = vpop.xlane.xlu0 %287
  %v289 = vsel %vm43, %v201, 0.0
  %290 = vadd.xlane.f32.xlu0 %v289
  %v291 = vpop.xlane.xlu0 %290
  %v292 = vsel %vm43, %v202, 0.0
  %293 = vadd.xlane.f32.xlu0 %v292
  %v294 = vpop.xlane.xlu0 %293
  %v295 = vsel %vm43, %v203, 0.0
  %296 = vadd.xlane.f32.xlu0 %v295
  %v297 = vpop.xlane.xlu0 %296
  %v298 = vsel %vm43, %v204, 0.0
  %299 = vadd.xlane.f32.xlu0 %v298
  %v300 = vpop.xlane.xlu0 %299
  %v301 = vmul.f32 %v207, %v140
  %v302 = vmul.f32 %v210, %v140
  %v303 = vmul.f32 %v213, %v140
  %v304 = vmul.f32 %v216, %v140
  %v305 = vmul.f32 %v219, %v140
  %v306 = vmul.f32 %v222, %v140
  %v307 = vmul.f32 %v225, %v140
  %v308 = vmul.f32 %v228, %v140
  %v309 = vmul.f32 %v231, %v140
  %v310 = vmul.f32 %v234, %v140
  %v311 = vmul.f32 %v237, %v140
  %v312 = vmul.f32 %v240, %v140
  %v313 = vmul.f32 %v243, %v140
  %v314 = vmul.f32 %v246, %v140
  %v315 = vmul.f32 %v249, %v140
  %v316 = vmul.f32 %v252, %v140
  %v317 = vmul.f32 %v255, %v140
  %v318 = vmul.f32 %v258, %v140
  %v319 = vmul.f32 %v261, %v140
  %v320 = vmul.f32 %v264, %v140
  %v321 = vmul.f32 %v267, %v140
  %v322 = vmul.f32 %v270, %v140
  %v323 = vmul.f32 %v273, %v140
  %v324 = vmul.f32 %v276, %v140
  %v325 = vmul.f32 %v279, %v140
  %v326 = vmul.f32 %v282, %v140
  %v327 = vmul.f32 %v285, %v140
  %v328 = vmul.f32 %v288, %v140
  %v329 = vmul.f32 %v291, %v140
  %v330 = vmul.f32 %v294, %v140
  %v331 = vmul.f32 %v297, %v140
  %v332 = vmul.f32 %v300, %v140
  %v333 = vmul.f32 %v141, %v141
  %v334 = vmul.f32 %v142, %v142
  %v335 = vmul.f32 %v143, %v143
  %v336 = vmul.f32 %v144, %v144
  %v337 = vmul.f32 %v145, %v145
  %v338 = vmul.f32 %v146, %v146
  %v339 = vmul.f32 %v147, %v147
  %v340 = vmul.f32 %v148, %v148
  %v341 = vmul.f32 %v149, %v149
  %v342 = vmul.f32 %v150, %v150
  %v343 = vmul.f32 %v151, %v151
  %v344 = vmul.f32 %v152, %v152
  %v345 = vmul.f32 %v153, %v153
  %v346 = vmul.f32 %v154, %v154
  %v347 = vmul.f32 %v155, %v155
  %v348 = vmul.f32 %v156, %v156
  %v349 = vmul.f32 %v157, %v157
  %v350 = vmul.f32 %v158, %v158
  %v351 = vmul.f32 %v159, %v159
  %v352 = vmul.f32 %v160, %v160
  %v353 = vmul.f32 %v161, %v161
  %v354 = vmul.f32 %v162, %v162
  %v355 = vmul.f32 %v163, %v163
  %v356 = vmul.f32 %v164, %v164
  %v357 = vmul.f32 %v165, %v165
  %v358 = vmul.f32 %v166, %v166
  %v359 = vmul.f32 %v167, %v167
  %v360 = vmul.f32 %v168, %v168
  %v361 = vmul.f32 %v169, %v169
  %v362 = vmul.f32 %v170, %v170
  %v363 = vmul.f32 %v171, %v171
  %v364 = vmul.f32 %v172, %v172
  %v365 = vsub.f32 %v301, %v333
  %v366 = vsub.f32 %v302, %v334
  %v367 = vsub.f32 %v303, %v335
  %v368 = vsub.f32 %v304, %v336
  %v369 = vsub.f32 %v305, %v337
  %v370 = vsub.f32 %v306, %v338
  %v371 = vsub.f32 %v307, %v339
  %v372 = vsub.f32 %v308, %v340
  %v373 = vsub.f32 %v309, %v341
  %v374 = vsub.f32 %v310, %v342
  %v375 = vsub.f32 %v311, %v343
  %v376 = vsub.f32 %v312, %v344
  %v377 = vsub.f32 %v313, %v345
  %v378 = vsub.f32 %v314, %v346
  %v379 = vsub.f32 %v315, %v347
  %v380 = vsub.f32 %v316, %v348
  %v381 = vsub.f32 %v317, %v349
  %v382 = vsub.f32 %v318, %v350
  %v383 = vsub.f32 %v319, %v351
  %v384 = vsub.f32 %v320, %v352
  %v385 = vsub.f32 %v321, %v353
  %v386 = vsub.f32 %v322, %v354
  %v387 = vsub.f32 %v323, %v355
  %v388 = vsub.f32 %v324, %v356
  %v389 = vsub.f32 %v325, %v357
  %v390 = vsub.f32 %v326, %v358
  %v391 = vsub.f32 %v327, %v359
  %v392 = vsub.f32 %v328, %v360
  %v393 = vsub.f32 %v329, %v361
  %v394 = vsub.f32 %v330, %v362
  %v395 = vsub.f32 %v331, %v363
  %v396 = vsub.f32 %v332, %v364
  %v397 = vmax.f32 %v365, 0.0
  %v398 = vmax.f32 %v366, 0.0
  %v399 = vmax.f32 %v367, 0.0
  %v400 = vmax.f32 %v368, 0.0
  %v401 = vmax.f32 %v369, 0.0
  %v402 = vmax.f32 %v370, 0.0
  %v403 = vmax.f32 %v371, 0.0
  %v404 = vmax.f32 %v372, 0.0
  %v405 = vmax.f32 %v373, 0.0
  %v406 = vmax.f32 %v374, 0.0
  %v407 = vmax.f32 %v375, 0.0
  %v408 = vmax.f32 %v376, 0.0
  %v409 = vmax.f32 %v377, 0.0
  %v410 = vmax.f32 %v378, 0.0
  %v411 = vmax.f32 %v379, 0.0
  %v412 = vmax.f32 %v380, 0.0
  %v413 = vmax.f32 %v381, 0.0
  %v414 = vmax.f32 %v382, 0.0
  %v415 = vmax.f32 %v383, 0.0
  %v416 = vmax.f32 %v384, 0.0
  %v417 = vmax.f32 %v385, 0.0
  %v418 = vmax.f32 %v386, 0.0
  %v419 = vmax.f32 %v387, 0.0
  %v420 = vmax.f32 %v388, 0.0
  %v421 = vmax.f32 %v389, 0.0
  %v422 = vmax.f32 %v390, 0.0
  %v423 = vmax.f32 %v391, 0.0
  %v424 = vmax.f32 %v392, 0.0
  %v425 = vmax.f32 %v393, 0.0
  %v426 = vmax.f32 %v394, 0.0
  %v427 = vmax.f32 %v395, 0.0
  %v428 = vmax.f32 %v396, 0.0
  %v429 = vadd.f32 %v397, 1e-05
  %v430 = vadd.f32 %v398, 1e-05
  %v431 = vadd.f32 %v399, 1e-05
  %v432 = vadd.f32 %v400, 1e-05
  %v433 = vadd.f32 %v401, 1e-05
  %v434 = vadd.f32 %v402, 1e-05
  %v435 = vadd.f32 %v403, 1e-05
  %v436 = vadd.f32 %v404, 1e-05
  %v437 = vadd.f32 %v405, 1e-05
  %v438 = vadd.f32 %v406, 1e-05
  %v439 = vadd.f32 %v407, 1e-05
  %v440 = vadd.f32 %v408, 1e-05
  %v441 = vadd.f32 %v409, 1e-05
  %v442 = vadd.f32 %v410, 1e-05
  %v443 = vadd.f32 %v411, 1e-05
  %v444 = vadd.f32 %v412, 1e-05
  %v445 = vadd.f32 %v413, 1e-05
  %v446 = vadd.f32 %v414, 1e-05
  %v447 = vadd.f32 %v415, 1e-05
  %v448 = vadd.f32 %v416, 1e-05
  %v449 = vadd.f32 %v417, 1e-05
  %v450 = vadd.f32 %v418, 1e-05
  %v451 = vadd.f32 %v419, 1e-05
  %v452 = vadd.f32 %v420, 1e-05
  %v453 = vadd.f32 %v421, 1e-05
  %v454 = vadd.f32 %v422, 1e-05
  %v455 = vadd.f32 %v423, 1e-05
  %v456 = vadd.f32 %v424, 1e-05
  %v457 = vadd.f32 %v425, 1e-05
  %v458 = vadd.f32 %v426, 1e-05
  %v459 = vadd.f32 %v427, 1e-05
  %v460 = vadd.f32 %v428, 1e-05
  %v461 = vrsqrt.pop %v429
  %v462 = vrsqrt.pop %v430
  %v463 = vrsqrt.pop %v431
  %v464 = vrsqrt.pop %v432
  %v465 = vrsqrt.pop %v433
  %v466 = vrsqrt.pop %v434
  %v467 = vrsqrt.pop %v435
  %v468 = vrsqrt.pop %v436
  %v469 = vrsqrt.pop %v437
  %v470 = vrsqrt.pop %v438
  %v471 = vrsqrt.pop %v439
  %v472 = vrsqrt.pop %v440
  %v473 = vrsqrt.pop %v441
  %v474 = vrsqrt.pop %v442
  %v475 = vrsqrt.pop %v443
  %v476 = vrsqrt.pop %v444
  %v477 = vrsqrt.pop %v445
  %v478 = vrsqrt.pop %v446
  %v479 = vrsqrt.pop %v447
  %v480 = vrsqrt.pop %v448
  %v481 = vrsqrt.pop %v449
  %v482 = vrsqrt.pop %v450
  %v483 = vrsqrt.pop %v451
  %v484 = vrsqrt.pop %v452
  %v485 = vrsqrt.pop %v453
  %v486 = vrsqrt.pop %v454
  %v487 = vrsqrt.pop %v455
  %v488 = vrsqrt.pop %v456
  %v489 = vrsqrt.pop %v457
  %v490 = vrsqrt.pop %v458
  %v491 = vrsqrt.pop %v459
  %v492 = vrsqrt.pop %v460
  %v493 = vld [vmem:[%s1] sm:$0x1]
  %v494 = vmul.f32 %v11, %v461
  %v495 = vmul.f32 %v12, %v462
  %v496 = vmul.f32 %v13, %v463
  %v497 = vmul.f32 %v14, %v464
  %v498 = vmul.f32 %v15, %v465
  %v499 = vmul.f32 %v16, %v466
  %v500 = vmul.f32 %v17, %v467
  %v501 = vmul.f32 %v18, %v468
  %v502 = vmul.f32 %v19, %v469
  %v503 = vmul.f32 %v20, %v470
  %v504 = vmul.f32 %v21, %v471
  %v505 = vmul.f32 %v22, %v472
  %v506 = vmul.f32 %v23, %v473
  %v507 = vmul.f32 %v24, %v474
  %v508 = vmul.f32 %v25, %v475
  %v509 = vmul.f32 %v26, %v476
  %v510 = vmul.f32 %v27, %v477
  %v511 = vmul.f32 %v28, %v478
  %v512 = vmul.f32 %v29, %v479
  %v513 = vmul.f32 %v30, %v480
  %v514 = vmul.f32 %v31, %v481
  %v515 = vmul.f32 %v32, %v482
  %v516 = vmul.f32 %v33, %v483
  %v517 = vmul.f32 %v34, %v484
  %v518 = vmul.f32 %v35, %v485
  %v519 = vmul.f32 %v36, %v486
  %v520 = vmul.f32 %v37, %v487
  %v521 = vmul.f32 %v38, %v488
  %v522 = vmul.f32 %v39, %v489
  %v523 = vmul.f32 %v40, %v490
  %v524 = vmul.f32 %v41, %v491
  %v525 = vmul.f32 %v42, %v492
  %v527 = vlaneseq
  %v528 = vshrl.u32 %v527, 7
  %v529 = vsub.s32 0, %v528
  %v530 = vrot.slane %v493, %v529
  %v532 = vmul.f32 %v494, %v530
  %v533 = vmul.f32 %v495, %v530
  %v534 = vmul.f32 %v496, %v530
  %v535 = vmul.f32 %v497, %v530
  %v536 = vmul.f32 %v498, %v530
  %v537 = vmul.f32 %v499, %v530
  %v538 = vmul.f32 %v500, %v530
  %v539 = vmul.f32 %v501, %v530
  %v540 = vmul.f32 %v502, %v530
  %v541 = vmul.f32 %v503, %v530
  %v542 = vmul.f32 %v504, %v530
  %v543 = vmul.f32 %v505, %v530
  %v544 = vmul.f32 %v506, %v530
  %v545 = vmul.f32 %v507, %v530
  %v546 = vmul.f32 %v508, %v530
  %v547 = vmul.f32 %v509, %v530
  %v548 = vmul.f32 %v510, %v530
  %v549 = vmul.f32 %v511, %v530
  %v550 = vmul.f32 %v512, %v530
  %v551 = vmul.f32 %v513, %v530
  %v552 = vmul.f32 %v514, %v530
  %v553 = vmul.f32 %v515, %v530
  %v554 = vmul.f32 %v516, %v530
  %v555 = vmul.f32 %v517, %v530
  %v556 = vmul.f32 %v518, %v530
  %v557 = vmul.f32 %v519, %v530
  %v558 = vmul.f32 %v520, %v530
  %v559 = vmul.f32 %v521, %v530
  %v560 = vmul.f32 %v522, %v530
  %v561 = vmul.f32 %v523, %v530
  %v562 = vmul.f32 %v524, %v530
  %v563 = vmul.f32 %v525, %v530
  %564 = vst.msk [vmem:[%s2] sm:$0xff] %vm43, %v532
  %565 = vst.msk [vmem:[%s2 + $0x8] sm:$0xff] %vm43, %v533
  %566 = vst.msk [vmem:[%s2 + $0x10] sm:$0xff] %vm43, %v534
  %567 = vst.msk [vmem:[%s2 + $0x18] sm:$0xff] %vm43, %v535
  %568 = vst.msk [vmem:[%s2 + $0x20] sm:$0xff] %vm43, %v536
  %569 = vst.msk [vmem:[%s2 + $0x28] sm:$0xff] %vm43, %v537
  %570 = vst.msk [vmem:[%s2 + $0x30] sm:$0xff] %vm43, %v538
  %571 = vst.msk [vmem:[%s2 + $0x38] sm:$0xff] %vm43, %v539
  %572 = vst.msk [vmem:[%s2 + $0x40] sm:$0xff] %vm43, %v540
  %573 = vst.msk [vmem:[%s2 + $0x48] sm:$0xff] %vm43, %v541
  %574 = vst.msk [vmem:[%s2 + $0x50] sm:$0xff] %vm43, %v542
  %575 = vst.msk [vmem:[%s2 + $0x58] sm:$0xff] %vm43, %v543
  %576 = vst.msk [vmem:[%s2 + $0x60] sm:$0xff] %vm43, %v544
  %577 = vst.msk [vmem:[%s2 + $0x68] sm:$0xff] %vm43, %v545
  %578 = vst.msk [vmem:[%s2 + $0x70] sm:$0xff] %vm43, %v546
  %579 = vst.msk [vmem:[%s2 + $0x78] sm:$0xff] %vm43, %v547
  %580 = vst.msk [vmem:[%s2 + $0x80] sm:$0xff] %vm43, %v548
  %581 = vst.msk [vmem:[%s2 + $0x88] sm:$0xff] %vm43, %v549
  %582 = vst.msk [vmem:[%s2 + $0x90] sm:$0xff] %vm43, %v550
  %583 = vst.msk [vmem:[%s2 + $0x98] sm:$0xff] %vm43, %v551
  %584 = vst.msk [vmem:[%s2 + $0xa0] sm:$0xff] %vm43, %v552
  %585 = vst.msk [vmem:[%s2 + $0xa8] sm:$0xff] %vm43, %v553
  %586 = vst.msk [vmem:[%s2 + $0xb0] sm:$0xff] %vm43, %v554
  %587 = vst.msk [vmem:[%s2 + $0xb8] sm:$0xff] %vm43, %v555
  %588 = vst.msk [vmem:[%s2 + $0xc0] sm:$0xff] %vm43, %v556
  %589 = vst.msk [vmem:[%s2 + $0xc8] sm:$0xff] %vm43, %v557
  %590 = vst.msk [vmem:[%s2 + $0xd0] sm:$0xff] %vm43, %v558
  %591 = vst.msk [vmem:[%s2 + $0xd8] sm:$0xff] %vm43, %v559
  %592 = vst.msk [vmem:[%s2 + $0xe0] sm:$0xff] %vm43, %v560
  %593 = vst.msk [vmem:[%s2 + $0xe8] sm:$0xff] %vm43, %v561
  %594 = vst.msk [vmem:[%s2 + $0xf0] sm:$0xff] %vm43, %v562
  %595 = vst.msk [vmem:[%s2 + $0xf8] sm:$0xff] %vm43, %v563
  // Predicated region
  $region10: #{tpu_custom_call.1} parent=0 // pred_check
    _
  $region11: #{tpu_custom_call.1} parent=0 // pred_check_branch
    %597 = sbr.rel (0) target = $region13
  $region12: #{tpu_custom_call.1} parent=0 // pred_region
    _
  $region13: #{tpu_custom_call.1} parent=0 // pred_fallthru
    _
  // Predicated region
  $region14: #{tpu_custom_call.1} parent=0 // pred_check
    _
  $region15: #{tpu_custom_call.1} parent=0 // pred_check_branch
    %599 = sbr.rel (0) target = $region17
  $region16: #{tpu_custom_call.1} parent=0 // pred_region
    _
  $region17: #{tpu_custom_call.1} parent=0 // pred_fallthru
    _

</llo_original>
